<compile_context>
chip_gen: v7x
topology: tpu7x:2x2x1
jax: 0.10.0
libtpu: 0.0.40
codegen_flags: <defaults>
</compile_context>

<pallas_src>
import numpy as np

import jax
import jax.numpy as jnp
from jax.experimental import pallas as pl
from jax.experimental.pallas import tpu as pltpu


# ----------------------------- Pallas kernel --------------------------------
def _lepe_attn_kernel(mask_ref, q_ref, kt_ref, v_ref, o_ref):
    """Per-block body (GB window-groups per grid step).

    mask_ref: (GLC, GLCv)   block-diagonal window/head mask, qk_scale*2 folded in
    q_ref   : (GB, N, GLC)  queries   (GLC  = gl * num_heads * d,  lane-dense)
    kt_ref  : (GB, GLC, N)  keys, pre-transposed inside each window group
    v_ref   : (GB, N, GLCv) values    (GLCv = gl * num_heads * dv, lane-dense)
    o_ref   : (GB, N, GLCv) output    (lane-dense -> unmasked full-width stores)
    """
    # No softmax -> reassociate (q k^T) v == q (k^T v); the NxN score is never built.
    kv = jnp.einsum("gan,gne->gae", kt_ref[...], v_ref[...],
                    preferred_element_type=jnp.float32)          # (GB, GLC, GLCv)
    # Single multiply: zeroes cross-window / cross-head terms AND applies qk_scale*2.
    kv = kv * mask_ref[...][None, :, :]
    out = jnp.einsum("gna,gae->gne", q_ref[...], kv,
                     preferred_element_type=jnp.float32)         # (GB, N, GLCv)
    o_ref[...] = out.astype(o_ref.dtype)


# ------------------------------ sizing helpers -------------------------------
def _round_up(x, m):
    return ((x + m - 1) // m) * m


def _vmem_capacity_bytes():
    try:
        return int(pltpu.get_tpu_info().vmem_capacity_bytes)
    except Exception:
        return 64 * 1024 * 1024        # assume the smallest (v7x per-TensorCore) figure


def _choose_lane_group(G, C, Cv, max_group=8):
    """Pack `gl` consecutive windows into the lane axis so q/k/v/out last dims become
    multiples of 128 (no lane padding, unmasked stores).  Capped so the block-diagonal
    FLOP blow-up stays bounded and so >=2 window-groups remain when G >= 2 (pipelining
    and 2-TensorCore sharding on v7x)."""
    want = 1
    if C < 128 and 128 % C == 0:
        want = 128 // C
    elif Cv < 128 and 128 % Cv == 0:
        want = 128 // Cv
    want = min(want, max_group)
    gl = 1
    for cand in range(1, want + 1):
        if G % cand == 0 and (G < 2 or G // cand >= 2):
            gl = cand
    return gl


def _choose_block_groups(Go, per_group_bytes, budget_bytes):
    """Largest divisor of Go whose padding-aware footprint fits the VMEM budget while
    keeping >= 4 grid steps when possible (>= 2 on tiny grids)."""
    cap = max(1, budget_bytes // max(1, per_group_bytes))
    if Go >= 4:
        cap = min(cap, Go // 4)
    elif Go >= 2:
        cap = min(cap, Go // 2)
    cap = max(1, min(cap, Go))
    best = 1
    for cand in range(1, cap + 1):
        if Go % cand == 0:
            best = cand
    return best


def _head_window_mask(gl, C, Cv, num_heads, scale2, dtype):
    """(gl*C, gl*Cv) mask: scale2 where row/col belong to the same window AND head."""
    d, dv = C // num_heads, Cv // num_heads
    rows = np.arange(gl * C)[:, None]
    cols = np.arange(gl * Cv)[None, :]
    same_window = (rows // C) == (cols // Cv)
    same_head = ((rows % C) // d) == ((cols % Cv) // dv)
    return jnp.asarray(np.where(same_window & same_head, scale2, 0.0).astype(dtype))


# ------------------------------- core call -----------------------------------
def _lepe_attention_core(qg, ktg, vg, *, gl, C, Cv, num_heads, scale2):
    """qg: (Go, N, gl*C); ktg: (Go, gl*C, N); vg: (Go, N, gl*Cv) -> (Go, N, gl*Cv)."""
    Go, N, GLC = qg.shape
    GLCv = vg.shape[-1]
    dtype = qg.dtype
    itemsize = jnp.dtype(dtype).itemsize

    mask = _head_window_mask(gl, C, Cv, num_heads, scale2, dtype)

    # Padding-aware VMEM footprint per window-group (f32 VMEM tile = (8, 128)):
    # double-buffered q/kt/v/out blocks + the KV intermediate + the pre-store result.
    rows_n, lane_n = _round_up(N, 8), _round_up(N, 128)
    rows_c, lane_c = _round_up(GLC, 8), _round_up(GLC, 128)
    lane_cv = _round_up(GLCv, 128)
    per_group = itemsize * (
        2 * (rows_n * lane_c + rows_c * lane_n + 2 * rows_n * lane_cv)
        + (rows_c * lane_cv + rows_n * lane_cv))

    cap = _vmem_capacity_bytes()                       # 128 MiB v5e/v6e, 64 MiB v7x
    budget = min(cap // 3, 40 << 20)                   # double-buffered working-set target
    vmem_limit = int(min(cap - (8 << 20), budget + (24 << 20)))

    gb = _choose_block_groups(Go, per_group, budget)

    return pl.pallas_call(
        _lepe_attn_kernel,
        out_shape=jax.ShapeDtypeStruct((Go, N, GLCv), dtype),
        grid=(Go // gb,),
        in_specs=[
            pl.BlockSpec((GLC, GLCv), lambda g: (0, 0)),     # resident constant mask
            pl.BlockSpec((gb, N, GLC), lambda g: (g, 0, 0)),
            pl.BlockSpec((gb, GLC, N), lambda g: (g, 0, 0)),
            pl.BlockSpec((gb, N, GLCv), lambda g: (g, 0, 0)),
        ],
        out_specs=pl.BlockSpec((gb, N, GLCv), lambda g: (g, 0, 0)),
        compiler_params=pltpu.CompilerParams(
            dimension_semantics=("parallel",),
            vmem_limit_bytes=vmem_limit),
    )(mask, qg, ktg, vg)


# ------------------------------ JAX wrapper ----------------------------------
def lepe_attention_forward(q, k, v, v_lamda, *, idx, split_num, num_heads, qk_scale):
    """Reproduces LePEAttention.forward exactly.

    q, k : (T, B, C, H, W);  v : (T, B, C * v_lamda, H, W)  ->  (T, B, C * v_lamda, H, W)
    """
    T, B, C, H, W = q.shape
    if idx == -1:
        H_num, W_num = 1, 1
    elif idx == 0:
        H_num, W_num = 1, split_num
    elif idx == 1:
        H_num, W_num = split_num, 1
    else:
        raise ValueError(f"ERROR MODE {idx}")
    H_sp, W_sp = H // H_num, W // W_num
    N = H_sp * W_sp
    Cv = C * v_lamda
    G = T * B * H_num * W_num

    gl = _choose_lane_group(G, C, Cv)
    Go = G // gl

    def to_grouped_nc(x, ch):
        # (T,B,ch,H,W) -> (Go, N, gl*ch): window partition, then `gl` consecutive windows
        # packed side-by-side into the lane axis (pure permutation -> one fused XLA pass).
        x = x.reshape(T, B, ch, H_num, H_sp, W_num, W_sp)
        x = x.transpose(0, 1, 3, 5, 4, 6, 2).reshape(G, N, ch)
        x = x.reshape(Go, gl, N, ch).transpose(0, 2, 1, 3)
        return x.reshape(Go, N, gl * ch)

    def to_grouped_cn(x, ch):
        # (T,B,ch,H,W) -> (Go, gl*ch, N): keys pre-transposed inside each window; the
        # window-in-group axis lands next to the channel axis, so no extra transpose.
        x = x.reshape(T, B, ch, H_num, H_sp, W_num, W_sp)
        x = x.transpose(0, 1, 3, 5, 2, 4, 6).reshape(G, ch, N)
        return x.reshape(Go, gl * ch, N)

    qg = to_grouped_nc(q, C)
    ktg = to_grouped_cn(k, C)
    vg = to_grouped_nc(v, Cv)

    out = _lepe_attention_core(qg, ktg, vg, gl=gl, C=C, Cv=Cv,
                               num_heads=num_heads, scale2=2.0 * qk_scale)

    # un-group + inverse window partition (heads already merged into Cv)
    out = out.reshape(Go, N, gl, Cv).transpose(0, 2, 1, 3).reshape(G, N, Cv)
    out = out.reshape(T, B, H_num, W_num, H_sp, W_sp, Cv)
    out = out.transpose(0, 1, 6, 2, 4, 3, 5)          # (T,B,Cv,H_num,H_sp,W_num,W_sp)
    return out.reshape(T, B, Cv, H, W)


# ------------------------- pure-JAX reference --------------------------------
def lepe_attention_reference(q, k, v, v_lamda, *, idx, split_num, num_heads, qk_scale):
    T, B, C, H, W = q.shape
    if idx == -1:
        H_num, W_num = 1, 1
    elif idx == 0:
        H_num, W_num = 1, split_num
    else:
        H_num, W_num = split_num, 1
    H_sp, W_sp = H // H_num, W // W_num
    N = H_sp * W_sp
    Cv = C * v_lamda

    def part(x, ch):
        x = x.reshape(T, B, ch, H // H_sp, H_sp, W // W_sp, W_sp)
        x = x.transpose(0, 1, 3, 5, 4, 6, 2)
        x = x.reshape(T, -1, N, ch).reshape(T, -1, N, num_heads, ch // num_heads)
        return x.transpose(0, 1, 3, 2, 4)

    qh, kh, vh = part(q, C), part(k, C), part(v, Cv)
    s = jnp.einsum("twhnd,twhmd->twhnm", qh, kh)
    x = jnp.einsum("twhnm,twhme->twhne", s, vh) * (qk_scale * 2.0)
    x = x.transpose(0, 1, 3, 2, 4).reshape(T, -1, N, Cv)
    x = x.reshape(T, B, H // H_sp, W // W_sp, H_sp, W_sp, Cv)
    x = x.transpose(0, 1, 2, 4, 3, 5, 6).reshape(T, B, H, W, Cv)
    return x.transpose(0, 1, 4, 2, 3)


# ---------------------------------- main --------------------------------------
if __name__ == "__main__":
    key = jax.random.PRNGKey(0)

    def run_case(name, *, T, B, C, H, W, num_heads, split_num, idx, v_lamda, case_key):
        qk_scale = (C // num_heads) ** -0.5
        kq, kk, kv = jax.random.split(case_key, 3)
        q = jax.random.normal(kq, (T, B, C, H, W), dtype=jnp.float32)
        k = jax.random.normal(kk, (T, B, C, H, W), dtype=jnp.float32)
        v = jax.random.normal(kv, (T, B, C * v_lamda, H, W), dtype=jnp.float32)

        out = lepe_attention_forward(q, k, v, v_lamda, idx=idx, split_num=split_num,
                                     num_heads=num_heads, qk_scale=qk_scale)
        out = jax.block_until_ready(out)

        ref = lepe_attention_reference(q, k, v, v_lamda, idx=idx, split_num=split_num,
                                       num_heads=num_heads, qk_scale=qk_scale)
        assert out.shape == (T, B, C * v_lamda, H, W), (name, out.shape)
        assert jnp.allclose(out, ref, atol=1e-4, rtol=1e-4), f"mismatch vs reference ({name})"

    k1, k2 = jax.random.split(key)
    # cswin branch (idx=0): 8x4 windows, 4 heads, v_lamda=2.
    run_case("idx0", T=2, B=2, C=32, H=8, W=8, num_heads=4, split_num=2,
             idx=0, v_lamda=2, case_key=k1)
    # last-stage branch (idx=-1): full 8x8 window (N=H*W), v_lamda=4 as in MS_Block_cswin.
    run_case("idx_last", T=2, B=1, C=32, H=8, W=8, num_heads=4, split_num=2,
             idx=-1, v_lamda=4, case_key=k2)

    print("KERNEL_OK")
</pallas_src>

<mosaic_0001>
module attributes {stable_mosaic.version = 11 : i64} {
  func.func @_lepe_attn_kernel(%arg0: i32, %arg1: memref<128x256xf32, #tpu.memory_space<vmem>>, %arg2: memref<1x32x128xf32, #tpu.memory_space<vmem>>, %arg3: memref<1x128x32xf32, #tpu.memory_space<vmem>>, %arg4: memref<1x32x256xf32, #tpu.memory_space<vmem>>, %arg5: memref<1x32x256xf32, #tpu.memory_space<vmem>>) attributes {dimension_semantics = [#tpu.dimension_semantics<parallel>], iteration_bounds = array<i64: 2>, scalar_prefetch = 0 : i64, scratch_operands = 0 : i64, tpu.core_type = #tpu.core_type<tc>, window_params = [{pipeline_mode = #tpu.pipeline_mode<synchronous>, transform_indices = @transform_0, window_bounds = array<i64: 128, 256>}, {transform_indices = @transform_1, window_bounds = array<i64: 1, 32, 128>}, {transform_indices = @transform_2, window_bounds = array<i64: 1, 128, 32>}, {transform_indices = @transform_3, window_bounds = array<i64: 1, 32, 256>}, {transform_indices = @transform_4, window_bounds = array<i64: 1, 32, 256>}]} {
    %c0 = arith.constant 0 : index
    %c0_0 = arith.constant 0 : index
    %c0_1 = arith.constant 0 : index
    %0 = vector.load %arg3[%c0, %c0_0, %c0_1] : memref<1x128x32xf32, #tpu.memory_space<vmem>>, vector<1x128x32xf32>
    %c0_2 = arith.constant 0 : index
    %c0_3 = arith.constant 0 : index
    %c0_4 = arith.constant 0 : index
    %1 = vector.load %arg4[%c0_2, %c0_3, %c0_4] : memref<1x32x256xf32, #tpu.memory_space<vmem>>, vector<1x32x256xf32>
    "tpu.trace_start"() <{level = 10 : i32, message = "gan,gne->gae"}> : () -> ()
    %cst = arith.constant dense<0.000000e+00> : vector<1x128x256xf32>
    %2 = tpu.matmul %0, %1, %cst {dimension_numbers = #tpu.dot_dimension_numbers<[2], [1], [1], [2], [0, 0, 0, 1, 1, 2], [0], [0]>} : vector<1x128x32xf32>, vector<1x32x256xf32>, vector<1x128x256xf32> -> vector<1x128x256xf32>
    "tpu.trace_stop"() : () -> ()
    %c0_5 = arith.constant 0 : index
    %c0_6 = arith.constant 0 : index
    %3 = vector.load %arg1[%c0_5, %c0_6] : memref<128x256xf32, #tpu.memory_space<vmem>>, vector<128x256xf32>
    %4 = vector.shape_cast %3 : vector<128x256xf32> to vector<1x128x256xf32>
    %5 = arith.mulf %2, %4 : vector<1x128x256xf32>
    %c0_7 = arith.constant 0 : index
    %c0_8 = arith.constant 0 : index
    %c0_9 = arith.constant 0 : index
    %6 = vector.load %arg2[%c0_7, %c0_8, %c0_9] : memref<1x32x128xf32, #tpu.memory_space<vmem>>, vector<1x32x128xf32>
    "tpu.trace_start"() <{level = 10 : i32, message = "gna,gae->gne"}> : () -> ()
    %cst_10 = arith.constant dense<0.000000e+00> : vector<1x32x256xf32>
    %7 = tpu.matmul %6, %5, %cst_10 {dimension_numbers = #tpu.dot_dimension_numbers<[2], [1], [1], [2], [0, 0, 0, 1, 1, 2], [0], [0]>} : vector<1x32x128xf32>, vector<1x128x256xf32>, vector<1x32x256xf32> -> vector<1x32x256xf32>
    "tpu.trace_stop"() : () -> ()
    %c0_11 = arith.constant 0 : index
    %c0_12 = arith.constant 0 : index
    %c0_13 = arith.constant 0 : index
    %8 = vector.load %arg5[%c0_11, %c0_12, %c0_13] : memref<1x32x256xf32, #tpu.memory_space<vmem>>, vector<1x32x256xf32>
    tpu.vector_store %arg5[%c0_11, %c0_12, %c0_13], %7 {strides = array<i32>} : memref<1x32x256xf32, #tpu.memory_space<vmem>>, vector<1x32x256xf32>,
    return
  }
  func.func @transform_0(%arg0: i32) -> (i32, i32) {
    %c0_i32 = arith.constant 0 : i32
    %c0_i32_0 = arith.constant 0 : i32
    %c0_i32_1 = arith.constant 0 : i32
    return %c0_i32, %c0_i32_0 : i32, i32
  }
  func.func @transform_1(%arg0: i32) -> (i32, i32, i32) {
    %c0_i32 = arith.constant 0 : i32
    %c0_i32_0 = arith.constant 0 : i32
    %c0_i32_1 = arith.constant 0 : i32
    return %arg0, %c0_i32, %c0_i32_0 : i32, i32, i32
  }
  func.func @transform_2(%arg0: i32) -> (i32, i32, i32) {
    %c0_i32 = arith.constant 0 : i32
    %c0_i32_0 = arith.constant 0 : i32
    %c0_i32_1 = arith.constant 0 : i32
    return %arg0, %c0_i32, %c0_i32_0 : i32, i32, i32
  }
  func.func @transform_3(%arg0: i32) -> (i32, i32, i32) {
    %c0_i32 = arith.constant 0 : i32
    %c0_i32_0 = arith.constant 0 : i32
    %c0_i32_1 = arith.constant 0 : i32
    return %arg0, %c0_i32, %c0_i32_0 : i32, i32, i32
  }
  func.func @transform_4(%arg0: i32) -> (i32, i32, i32) {
    %c0_i32 = arith.constant 0 : i32
    %c0_i32_0 = arith.constant 0 : i32
    %c0_i32_1 = arith.constant 0 : i32
    return %arg0, %c0_i32, %c0_i32_0 : i32, i32, i32
  }
}

</mosaic_0001>

<llo_original>
// kernel: tpu_custom_call.1
$region0: #{tpu_custom_call.1}
  #allocation0 [shape = 'u32[]', space=smem, size = 0x4, offset = 0x4, fixed_abs, tag = 'smem constant byte address 0x4 - core index']
  #allocation1 [shape = 'u32[144,128]{1,0:T(1,128)}', space=vmem, size = 0x12000, scoped, tag = 'internal scratch']
  %s0 = inlined_call_operand.vmem [shape: f32[128,256], index: 0, kind: input, shape index: {}]
  %s1 = inlined_call_operand.vmem [shape: f32[2,32,128], index: 1, kind: input, shape index: {}]
  %s2 = inlined_call_operand.vmem [shape: f32[2,128,32], index: 2, kind: input, shape index: {}]
  %s3 = inlined_call_operand.hbm [shape: f32[2,32,256], index: 3, kind: input, shape index: {}]
  %s4 = inlined_call_operand.hbm [shape: f32[2,32,256], index: 4, kind: output, shape index: {}]
  %s5 = sld [smem:[#allocation0]]
  $region53: #{tpu_custom_call.1} parent=0
    _
  %s7 = ssub.s32 1, %s5
  %s8 = scalar_select 0, %s7, %s5
  $region1: #{tpu_custom_call.1} parent=0
    #allocation2 [shape = 'u8[65536]{0}', space=vmem, size = 0x10000, scoped, tag = 'input window, operand 3']
    #allocation3 [shape = 's32[2]{0}', space=sflag, size = 0x8, scoped, tag = 'scoped memory for tpu_custom_call.1']
    #allocation4 [shape = 's32[2]{0}', space=sflag, size = 0x8, scoped, tag = 'scoped memory for tpu_custom_call.1']
    #allocation5 [shape = 'u8[65536]{0}', space=vmem, size = 0x10000, scoped, tag = 'output window, operand 0']
    %9 = vsyncpa [#allocation3], 0
    %s10 = scalar_lea.sflag [#allocation3], 1
    %11 = vsyncpa %s10, 0
    %12 = vsyncpa [#allocation4], 0
    %s13 = scalar_lea.sflag [#allocation4], 1
    %14 = vsyncpa %s13, 0
    loop: start=0, step=1, limit=4
    $region2: #{tpu_custom_call.1} parent=1 // loop_pre_header
      _
    $region3: #{tpu_custom_call.1} parent=1 // loop_header
      %s16 = sphi 0, %s20
      %p17 = scmp.ge.s32.totalorder %s16, 4
      %s24 = sphi 0, %s24
      %s26 = sphi 0, %s24
      %s27 = sphi 0, %s26
      %s41 = sphi 0, %s27
      %s47 = sphi 0, %s49
      %s50 = sphi 0, %s47
      %s51 = sphi 0, %s50
      %s67 = sphi 0, %s51
      %s73 = sphi 0, %s75
      %s76 = sphi 0, %s73
      %s77 = sphi 0, %s76
      %s93 = sphi 0, %s77
      %s99 = sphi 0, %s101
      %s102 = sphi 0, %s99
      %s103 = sphi 0, %s102
      %s119 = sphi 0, %s103
      %s125 = sphi 0, %s127
      %s128 = sphi 0, %s125
      %s129 = sphi 0, %s128
      %s145 = sphi 0, %s129
    $region4: #{tpu_custom_call.1} parent=1 // loop_header_branch
      %19 = sbr.rel (%p17) target = $region8
    $region5: #{tpu_custom_call.1} parent=1 // loop_body
      %s21 = ssub.s32 %s16, 1
      %s22 = ssub.s32 %s16, 2
      %s23 = sadd.s32 %s16, 1
      %s25 = sadd.s32 %s24, 1
      %p28 = scmp.eq.s32.totalorder %s16, 1
      %p29 = scmp.ne.s32.totalorder %s24, %s26
      %p30 = scmp.eq.s32.totalorder %s16, 0
      %p31 = por %p29, %p30
      %p32 = scmp.ne.s32.totalorder %s24, %s26
      %p33 = scmp.eq.s32.totalorder %s21, 1
      %p34 = por %p32, %p33
      %p35 = scmp.ne.s32.totalorder %s26, %s27
      %p36 = scmp.eq.s32.totalorder %s21, 0
      %p37 = por %p35, %p36
      %p38 = scmp.ne.s32.totalorder %s26, %s27
      %p39 = scmp.eq.s32.totalorder %s22, 1
      %p40 = por %p38, %p39
      %p42 = scmp.ne.s32.totalorder %s27, %s41
      %p43 = scmp.eq.s32.totalorder %s22, 0
      %p44 = por %p42, %p43
      %s45 = ssub.s32 %s16, %s23
      %p46 = scmp.eq.s32.totalorder %s45, 0
      %s48 = sadd.s32 %s47, 1
      %s49 = scalar_select %p46, %s47, %s48
      %p52 = pneg %p46
      %p53 = scmp.eq.s32.totalorder %s16, 1
      %p54 = por %p52, %p53
      %p55 = scmp.ne.s32.totalorder %s47, %s50
      %p56 = scmp.eq.s32.totalorder %s16, 0
      %p57 = por %p55, %p56
      %p58 = scmp.ne.s32.totalorder %s47, %s50
      %p59 = scmp.eq.s32.totalorder %s21, 1
      %p60 = por %p58, %p59
      %p61 = scmp.ne.s32.totalorder %s50, %s51
      %p62 = scmp.eq.s32.totalorder %s21, 0
      %p63 = por %p61, %p62
      %p64 = scmp.ne.s32.totalorder %s50, %s51
      %p65 = scmp.eq.s32.totalorder %s22, 1
      %p66 = por %p64, %p65
      %p68 = scmp.ne.s32.totalorder %s51, %s67
      %p69 = scmp.eq.s32.totalorder %s22, 0
      %p70 = por %p68, %p69
      %s71 = ssub.s32 %s16, %s23
      %p72 = scmp.eq.s32.totalorder %s71, 0
      %s74 = sadd.s32 %s73, 1
      %s75 = scalar_select %p72, %s73, %s74
      %p78 = pneg %p72
      %p79 = scmp.eq.s32.totalorder %s16, 1
      %p80 = por %p78, %p79
      %p81 = scmp.ne.s32.totalorder %s73, %s76
      %p82 = scmp.eq.s32.totalorder %s16, 0
      %p83 = por %p81, %p82
      %p84 = scmp.ne.s32.totalorder %s73, %s76
      %p85 = scmp.eq.s32.totalorder %s21, 1
      %p86 = por %p84, %p85
      %p87 = scmp.ne.s32.totalorder %s76, %s77
      %p88 = scmp.eq.s32.totalorder %s21, 0
      %p89 = por %p87, %p88
      %p90 = scmp.ne.s32.totalorder %s76, %s77
      %p91 = scmp.eq.s32.totalorder %s22, 1
      %p92 = por %p90, %p91
      %p94 = scmp.ne.s32.totalorder %s77, %s93
      %p95 = scmp.eq.s32.totalorder %s22, 0
      %p96 = por %p94, %p95
      %s97 = ssub.s32 %s16, %s23
      %p98 = scmp.eq.s32.totalorder %s97, 0
      %s100 = sadd.s32 %s99, 1
      %s101 = scalar_select %p98, %s99, %s100
      %p104 = pneg %p98
      %p105 = scmp.eq.s32.totalorder %s16, 1
      %p106 = por %p104, %p105
      %p107 = scmp.ne.s32.totalorder %s99, %s102
      %p108 = scmp.eq.s32.totalorder %s16, 0
      %p109 = por %p107, %p108
      %p110 = scmp.ne.s32.totalorder %s99, %s102
      %p111 = scmp.eq.s32.totalorder %s21, 1
      %p112 = por %p110, %p111
      %p113 = scmp.ne.s32.totalorder %s102, %s103
      %p114 = scmp.eq.s32.totalorder %s21, 0
      %p115 = por %p113, %p114
      %p116 = scmp.ne.s32.totalorder %s102, %s103
      %p117 = scmp.eq.s32.totalorder %s22, 1
      %p118 = por %p116, %p117
      %p120 = scmp.ne.s32.totalorder %s103, %s119
      %p121 = scmp.eq.s32.totalorder %s22, 0
      %p122 = por %p120, %p121
      %s123 = ssub.s32 %s16, %s23
      %p124 = scmp.eq.s32.totalorder %s123, 0
      %s126 = sadd.s32 %s125, 1
      %s127 = scalar_select %p124, %s125, %s126
      %p130 = pneg %p124
      %p131 = scmp.eq.s32.totalorder %s16, 1
      %p132 = por %p130, %p131
      %p133 = scmp.ne.s32.totalorder %s125, %s128
      %p134 = scmp.eq.s32.totalorder %s16, 0
      %p135 = por %p133, %p134
      %p136 = scmp.ne.s32.totalorder %s125, %s128
      %p137 = scmp.eq.s32.totalorder %s21, 1
      %p138 = por %p136, %p137
      %p139 = scmp.ne.s32.totalorder %s128, %s129
      %p140 = scmp.eq.s32.totalorder %s21, 0
      %p141 = por %p139, %p140
      %p142 = scmp.ne.s32.totalorder %s128, %s129
      %p143 = scmp.eq.s32.totalorder %s22, 1
      %p144 = por %p142, %p143
      %p146 = scmp.ne.s32.totalorder %s129, %s145
      %p147 = scmp.eq.s32.totalorder %s22, 0
      %p148 = por %p146, %p147
      %p149 = scmp.le.s32.totalorder 1, %s16
      %p150 = scmp.lt.s32.totalorder %s16, 3
      %p151 = pnand %p149, %p150
      %p152 = pneg %p151
      // Predicated region
      $region9: #{tpu_custom_call.1} parent=5 // pred_check
        _
      $region10: #{tpu_custom_call.1} parent=5 // pred_check_branch
        %154 = sbr.rel (%p151) target = $region12
      $region11: #{tpu_custom_call.1} parent=5 // pred_region
        %s155 = ssub.s32 %s16, 1
        // Predicated region
        $region13: #{tpu_custom_call.1} parent=11 // pred_check
          %p156 = pneg %p37
        $region14: #{tpu_custom_call.1} parent=11 // pred_check_branch
          %158 = sbr.rel (%p156) target = $region16
        $region15: #{tpu_custom_call.1} parent=11 // pred_region
          _
        $region16: #{tpu_custom_call.1} parent=11 // pred_fallthru
          _
      $region12: #{tpu_custom_call.1} parent=5 // pred_fallthru
        _
      %p159 = scmp.lt.s32.totalorder %s16, 2
      // Predicated region
      $region17: #{tpu_custom_call.1} parent=5 // pred_check
        %p160 = pneg %p159
      $region18: #{tpu_custom_call.1} parent=5 // pred_check_branch
        %162 = sbr.rel (%p160) target = $region20
      $region19: #{tpu_custom_call.1} parent=5 // pred_region
        // Predicated region
        $region21: #{tpu_custom_call.1} parent=19 // pred_check
          %p163 = pneg %p57
        $region22: #{tpu_custom_call.1} parent=19 // pred_check_branch
          %165 = sbr.rel (%p163) target = $region24
        $region23: #{tpu_custom_call.1} parent=19 // pred_region
          %p166 = scmp.lt.s32.totalorder %s16, 1
          %s167 = scalar_select %p166, %s16, 1
          %s168 = smul.addr %s167, 4
          %s169 = smul.addr %s168, 8
          %s170 = scalar_lea.vmem %s1, %s169
        $region24: #{tpu_custom_call.1} parent=19 // pred_fallthru
          _
        // Predicated region
        $region25: #{tpu_custom_call.1} parent=19 // pred_check
          %p171 = pneg %p83
        $region26: #{tpu_custom_call.1} parent=19 // pred_check_branch
          %173 = sbr.rel (%p171) target = $region28
        $region27: #{tpu_custom_call.1} parent=19 // pred_region
          %p174 = scmp.lt.s32.totalorder %s16, 1
          %s175 = scalar_select %p174, %s16, 1
          %s176 = smul.addr %s175, 16
          %s177 = smul.addr %s176, 8
          %s178 = scalar_lea.vmem %s2, %s177
        $region28: #{tpu_custom_call.1} parent=19 // pred_fallthru
          _
        // Predicated region
        $region29: #{tpu_custom_call.1} parent=19 // pred_check
          %p179 = pneg %p109
        $region30: #{tpu_custom_call.1} parent=19 // pred_check_branch
          %181 = sbr.rel (%p179) target = $region32
        $region31: #{tpu_custom_call.1} parent=19 // pred_region
          %s182 = sand.u32 %s99, 1
          %s183 = scalar_lea.sflag [#allocation3], %s182
          %s184 = sand.u32 %s99, 1
          %s185 = smul.addr %s184, 64
          %s186 = scalar_lea.vmem [#allocation2], %s185
          %s188 = ssub.s32 1024, 1024
          %189 = vsyncadd %s183, %s188
          %s190 = smul.addr %s16, 8
          %s191 = smul.addr %s190, 128
          %s192 = scalar_lea.hbm %s3, %s191
          %s193 = sshll.u32 %s186, 4
          %s194 = int_to_ptr.vmem [resolvable:$true] %s193
          %199 = dma.hbm_to_vmem [thread:$0]  %s192, 1024, %s194, %s183, 256, 256, 16
        $region32: #{tpu_custom_call.1} parent=19 // pred_fallthru
          _
      $region20: #{tpu_custom_call.1} parent=5 // pred_fallthru
        _
      %p200 = scmp.le.s32.totalorder 1, %s16
      %p201 = scmp.lt.s32.totalorder %s16, 3
      %p202 = pnand %p200, %p201
      %p203 = pneg %p202
      // Predicated region
      $region33: #{tpu_custom_call.1} parent=5 // pred_check
        _
      $region34: #{tpu_custom_call.1} parent=5 // pred_check_branch
        %205 = sbr.rel (%p202) target = $region36
      $region35: #{tpu_custom_call.1} parent=5 // pred_region
        %s206 = ssub.s32 %s16, 1
        %s207 = sand.u32 %s102, 1
        %s208 = scalar_lea.sflag [#allocation3], %s207
        %s209 = sand.u32 %s102, 1
        %s210 = smul.addr %s209, 64
        %s211 = scalar_lea.vmem [#allocation2], %s210
        // Predicated region
        $region37: #{tpu_custom_call.1} parent=35 // pred_check
          %p212 = pneg %p115
        $region38: #{tpu_custom_call.1} parent=35 // pred_check_branch
          %214 = sbr.rel (%p212) target = $region40
        $region39: #{tpu_custom_call.1} parent=35 // pred_region
          %215 = dma.done %s208, 1024
        $region40: #{tpu_custom_call.1} parent=35 // pred_fallthru
          _
        %p216 = pneg %p37
        %p217 = pneg %p34
        %p218 = scmp.lt.s32.totalorder %s21, 1
        %s219 = scalar_select %p218, %s21, 1
        %s220 = smul.addr %s219, 4
        %s221 = smul.addr %s220, 8
        %s222 = scalar_lea.vmem %s1, %s221
        %p223 = pneg %p63
        %p224 = pneg %p60
        %p225 = scmp.lt.s32.totalorder %s21, 1
        %s226 = scalar_select %p225, %s21, 1
        %s227 = smul.addr %s226, 16
        %s228 = smul.addr %s227, 8
        %s229 = scalar_lea.vmem %s2, %s228
        %p230 = pneg %p89
        %p231 = pneg %p86
        %s232 = sand.u32 %s102, 1
        %s233 = scalar_lea.sflag [#allocation3], %s232
        %s234 = sand.u32 %s102, 1
        %s235 = smul.addr %s234, 64
        %s236 = scalar_lea.vmem [#allocation2], %s235
        %p237 = pneg %p115
        %p238 = pneg %p112
        %p239 = pneg %p141
        %p240 = pneg %p138
        %s241 = sand.u32 %s128, 1
        %s242 = scalar_lea.sflag [#allocation4], %s241
        %s243 = sand.u32 %s128, 1
        %s244 = smul.addr %s243, 64
        %s245 = scalar_lea.vmem [#allocation5], %s244
        %p246 = scmp.lt.s32.totalorder %s21, 1
        %s247 = scalar_select %p246, %s21, 1
        %s248 = smul.addr %s247, 4
        %s249 = smul.addr %s248, 8
        %s250 = scalar_lea.vmem %s1, %s249
        %p251 = scmp.lt.s32.totalorder %s21, 1
        %s252 = scalar_select %p251, %s21, 1
        %s253 = smul.addr %s252, 16
        %s254 = smul.addr %s253, 8
        %s255 = scalar_lea.vmem %s2, %s254
        %v256 = vld [vmem:[%s255] sm:$0xff]
        %v257 = vld [vmem:[%s255 + $0x8] sm:$0xff]
        %v258 = vld [vmem:[%s255 + $0x10] sm:$0xff]
        %v259 = vld [vmem:[%s255 + $0x18] sm:$0xff]
        %v260 = vld [vmem:[%s255 + $0x20] sm:$0xff]
        %v261 = vld [vmem:[%s255 + $0x28] sm:$0xff]
        %v262 = vld [vmem:[%s255 + $0x30] sm:$0xff]
        %v263 = vld [vmem:[%s255 + $0x38] sm:$0xff]
        %v264 = vld [vmem:[%s255 + $0x40] sm:$0xff]
        %v265 = vld [vmem:[%s255 + $0x48] sm:$0xff]
        %v266 = vld [vmem:[%s255 + $0x50] sm:$0xff]
        %v267 = vld [vmem:[%s255 + $0x58] sm:$0xff]
        %v268 = vld [vmem:[%s255 + $0x60] sm:$0xff]
        %v269 = vld [vmem:[%s255 + $0x68] sm:$0xff]
        %v270 = vld [vmem:[%s255 + $0x70] sm:$0xff]
        %v271 = vld [vmem:[%s255 + $0x78] sm:$0xff]
        %v272 = vld [vmem:[%s211] sm:$0xff]
        %v273 = vld [vmem:[%s211 + $0x8] sm:$0xff]
        %v274 = vld [vmem:[%s211 + $0x10] sm:$0xff]
        %v275 = vld [vmem:[%s211 + $0x18] sm:$0xff]
        %v276 = vld [vmem:[%s211 + $0x20] sm:$0xff]
        %v277 = vld [vmem:[%s211 + $0x28] sm:$0xff]
        %v278 = vld [vmem:[%s211 + $0x30] sm:$0xff]
        %v279 = vld [vmem:[%s211 + $0x38] sm:$0xff]
        %vm280 = vcmask 261120
        %v282 = vsel %vm280, %v256, 0
        %v285 = vsel %vm280, %v257, 0
        %v288 = vsel %vm280, %v258, 0
        %v291 = vsel %vm280, %v259, 0
        %v294 = vsel %vm280, %v260, 0
        %v297 = vsel %vm280, %v261, 0
        %v300 = vsel %vm280, %v262, 0
        %v303 = vsel %vm280, %v263, 0
        %v306 = vsel %vm280, %v264, 0
        %v309 = vsel %vm280, %v265, 0
        %v312 = vsel %vm280, %v266, 0
        %v315 = vsel %vm280, %v267, 0
        %v318 = vsel %vm280, %v268, 0
        %v321 = vsel %vm280, %v269, 0
        %v324 = vsel %vm280, %v270, 0
        %v327 = vsel %vm280, %v271, 0
        %329 = vmatprep.subr.mxu0 %v273
        %330 = vmatpush1.msra.mxu0 %v272
        %331 = vmatprep.subr.mxu0 %v275
        %332 = vmatpush1.msra.mxu0 %v274
        %333 = vmatprep.subr.mxu0 %v277
        %334 = vmatpush1.msra.mxu0 %v276
        %335 = vmatprep.subr.mxu0 %v279
        %336 = vmatpush1.msra.mxu0 %v278
        %337 = vmatprep.subr.mxu0 0.0
        %338 = vmatpush1.msra.mxu0 0.0
        %339 = vmatprep.subr.mxu0 0.0
        %340 = vmatpush1.msra.mxu0 0.0
        %341 = vmatprep.subr.mxu0 0.0
        %342 = vmatpush1.msra.mxu0 0.0
        %343 = vmatprep.subr.mxu0 0.0
        %344 = vmatpush1.msra.mxu0 0.0
        %345 = vmatprep.subr.mxu0 0.0
        %346 = vmatpush1.msra.mxu0 0.0
        %347 = vmatprep.subr.mxu0 0.0
        %348 = vmatpush1.msra.mxu0 0.0
        %349 = vmatprep.subr.mxu0 0.0
        %350 = vmatpush1.msra.mxu0 0.0
        %351 = vmatprep.subr.mxu0 0.0
        %352 = vmatpush1.msra.mxu0 0.0
        %353 = vmatprep.subr.mxu0 0.0
        %354 = vmatpush1.msra.mxu0 0.0
        %355 = vmatprep.subr.mxu0 0.0
        %356 = vmatpush1.msra.mxu0 0.0
        %357 = vmatprep.subr.mxu0 0.0
        %358 = vmatpush1.msra.mxu0 0.0
        %359 = vmatprep.subr.mxu0 0.0
        %360 = vmatpush1.msra.mxu0 0.0
        %361 = vmatprep.subr.mxu0 0.0
        %362 = vmatpush1.msra.mxu0 0.0
        %363 = vmatprep.subr.mxu0 0.0
        %364 = vmatpush1.msra.mxu0 0.0
        %365 = vmatprep.subr.mxu0 0.0
        %366 = vmatpush1.msra.mxu0 0.0
        %367 = vmatprep.subr.mxu0 0.0
        %368 = vmatpush1.msra.mxu0 0.0
        %369 = vmatprep.subr.mxu0 0.0
        %370 = vmatpush1.msra.mxu0 0.0
        %371 = vmatprep.subr.mxu0 0.0
        %372 = vmatpush1.msra.mxu0 0.0
        %373 = vmatprep.subr.mxu0 0.0
        %374 = vmatpush1.msra.mxu0 0.0
        %375 = vmatprep.subr.mxu0 0.0
        %376 = vmatpush1.msra.mxu0 0.0
        %377 = vmatprep.subr.mxu0 0.0
        %378 = vmatpush1.msra.mxu0 0.0
        %379 = vmatprep.subr.mxu0 0.0
        %380 = vmatpush1.msra.mxu0 0.0
        %381 = vmatprep.subr.mxu0 0.0
        %382 = vmatpush1.msra.mxu0 0.0
        %383 = vmatprep.subr.mxu0 0.0
        %384 = vmatpush1.msra.mxu0 0.0
        %385 = vmatprep.subr.mxu0 0.0
        %386 = vmatpush1.msra.mxu0 0.0
        %387 = vmatprep.subr.mxu0 0.0
        %388 = vmatpush1.msra.mxu0 0.0
        %389 = vmatprep.subr.mxu0 0.0
        %390 = vmatpush1.msra.mxu0 0.0
        %391 = vmatprep.subr.mxu0 0.0
        %392 = vmatpush1.msra.mxu0 0.0
        %393 = vmatprep.mubr.f32.mxu0 0.0
        %394 = vmatmul.mubr.f32.gmra.mrb[0].mxu0 %v282
        %v395 = vpop.f32.mrb[0].mxu0
        %v396 = vadd.f32 0.0, %v395
        %v397 = vpop.f32.mrb[0].mxu0
        %v398 = vadd.f32 0.0, %v397
        %399 = vmatprep.mubr.f32.mxu0 0.0
        %400 = vmatmul.mubr.f32.gmra.mrb[0].mxu0 %v285
        %v401 = vpop.f32.mrb[0].mxu0
        %v402 = vadd.f32 0.0, %v401
        %v403 = vpop.f32.mrb[0].mxu0
        %v404 = vadd.f32 0.0, %v403
        %405 = vmatprep.mubr.f32.mxu0 0.0
        %406 = vmatmul.mubr.f32.gmra.mrb[0].mxu0 %v288
        %v407 = vpop.f32.mrb[0].mxu0
        %v408 = vadd.f32 0.0, %v407
        %v409 = vpop.f32.mrb[0].mxu0
        %v410 = vadd.f32 0.0, %v409
        %411 = vmatprep.mubr.f32.mxu0 0.0
        %412 = vmatmul.mubr.f32.gmra.mrb[0].mxu0 %v291
        %v413 = vpop.f32.mrb[0].mxu0
        %v414 = vadd.f32 0.0, %v413
        %v415 = vpop.f32.mrb[0].mxu0
        %v416 = vadd.f32 0.0, %v415
        %417 = vmatprep.mubr.f32.mxu0 0.0
        %418 = vmatmul.mubr.f32.gmra.mrb[0].mxu0 %v294
        %v419 = vpop.f32.mrb[0].mxu0
        %v420 = vadd.f32 0.0, %v419
        %v421 = vpop.f32.mrb[0].mxu0
        %v422 = vadd.f32 0.0, %v421
        %423 = vmatprep.mubr.f32.mxu0 0.0
        %424 = vmatmul.mubr.f32.gmra.mrb[0].mxu0 %v297
        %v425 = vpop.f32.mrb[0].mxu0
        %v426 = vadd.f32 0.0, %v425
        %v427 = vpop.f32.mrb[0].mxu0
        %v428 = vadd.f32 0.0, %v427
        %429 = vmatprep.mubr.f32.mxu0 0.0
        %430 = vmatmul.mubr.f32.gmra.mrb[0].mxu0 %v300
        %v431 = vpop.f32.mrb[0].mxu0
        %v432 = vadd.f32 0.0, %v431
        %v433 = vpop.f32.mrb[0].mxu0
        %v434 = vadd.f32 0.0, %v433
        %435 = vmatprep.mubr.f32.mxu0 0.0
        %436 = vmatmul.mubr.f32.gmra.mrb[0].mxu0 %v303
        %v437 = vpop.f32.mrb[0].mxu0
        %v438 = vadd.f32 0.0, %v437
        %v439 = vpop.f32.mrb[0].mxu0
        %v440 = vadd.f32 0.0, %v439
        %441 = vmatprep.mubr.f32.mxu0 0.0
        %442 = vmatmul.mubr.f32.gmra.mrb[0].mxu0 %v306
        %v443 = vpop.f32.mrb[0].mxu0
        %v444 = vadd.f32 0.0, %v443
        %v445 = vpop.f32.mrb[0].mxu0
        %v446 = vadd.f32 0.0, %v445
        %447 = vmatprep.mubr.f32.mxu0 0.0
        %448 = vmatmul.mubr.f32.gmra.mrb[0].mxu0 %v309
        %v449 = vpop.f32.mrb[0].mxu0
        %v450 = vadd.f32 0.0, %v449
        %v451 = vpop.f32.mrb[0].mxu0
        %v452 = vadd.f32 0.0, %v451
        %453 = vmatprep.mubr.f32.mxu0 0.0
        %454 = vmatmul.mubr.f32.gmra.mrb[0].mxu0 %v312
        %v455 = vpop.f32.mrb[0].mxu0
        %v456 = vadd.f32 0.0, %v455
        %v457 = vpop.f32.mrb[0].mxu0
        %v458 = vadd.f32 0.0, %v457
        %459 = vmatprep.mubr.f32.mxu0 0.0
        %460 = vmatmul.mubr.f32.gmra.mrb[0].mxu0 %v315
        %v461 = vpop.f32.mrb[0].mxu0
        %v462 = vadd.f32 0.0, %v461
        %v463 = vpop.f32.mrb[0].mxu0
        %v464 = vadd.f32 0.0, %v463
        %465 = vmatprep.mubr.f32.mxu0 0.0
        %466 = vmatmul.mubr.f32.gmra.mrb[0].mxu0 %v318
        %v467 = vpop.f32.mrb[0].mxu0
        %v468 = vadd.f32 0.0, %v467
        %v469 = vpop.f32.mrb[0].mxu0
        %v470 = vadd.f32 0.0, %v469
        %471 = vmatprep.mubr.f32.mxu0 0.0
        %472 = vmatmul.mubr.f32.gmra.mrb[0].mxu0 %v321
        %v473 = vpop.f32.mrb[0].mxu0
        %v474 = vadd.f32 0.0, %v473
        %v475 = vpop.f32.mrb[0].mxu0
        %v476 = vadd.f32 0.0, %v475
        %477 = vmatprep.mubr.f32.mxu0 0.0
        %478 = vmatmul.mubr.f32.gmra.mrb[0].mxu0 %v324
        %v479 = vpop.f32.mrb[0].mxu0
        %v480 = vadd.f32 0.0, %v479
        %v481 = vpop.f32.mrb[0].mxu0
        %v482 = vadd.f32 0.0, %v481
        %483 = vmatprep.mubr.f32.mxu0 0.0
        %484 = vmatmul.mubr.f32.gmra.mrb[0].mxu0 %v327
        %v485 = vpop.f32.mrb[0].mxu0
        %v486 = vadd.f32 0.0, %v485
        %v487 = vpop.f32.mrb[0].mxu0
        %v488 = vadd.f32 0.0, %v487
        %489 = vdwg.mxu0
        %v490 = vld [vmem:[%s0] sm:$0xff]
        %v491 = vld [vmem:[%s0 + $0x8] sm:$0xff]
        %v492 = vld [vmem:[%s0 + $0x10] sm:$0xff]
        %v493 = vld [vmem:[%s0 + $0x18] sm:$0xff]
        %v494 = vld [vmem:[%s0 + $0x20] sm:$0xff]
        %v495 = vld [vmem:[%s0 + $0x28] sm:$0xff]
        %v496 = vld [vmem:[%s0 + $0x30] sm:$0xff]
        %v497 = vld [vmem:[%s0 + $0x38] sm:$0xff]
        %v498 = vld [vmem:[%s0 + $0x40] sm:$0xff]
        %v499 = vld [vmem:[%s0 + $0x48] sm:$0xff]
        %v500 = vld [vmem:[%s0 + $0x50] sm:$0xff]
        %v501 = vld [vmem:[%s0 + $0x58] sm:$0xff]
        %v502 = vld [vmem:[%s0 + $0x60] sm:$0xff]
        %v503 = vld [vmem:[%s0 + $0x68] sm:$0xff]
        %v504 = vld [vmem:[%s0 + $0x70] sm:$0xff]
        %v505 = vld [vmem:[%s0 + $0x78] sm:$0xff]
        %v506 = vld [vmem:[%s0 + $0x80] sm:$0xff]
        %v507 = vld [vmem:[%s0 + $0x88] sm:$0xff]
        %v508 = vld [vmem:[%s0 + $0x90] sm:$0xff]
        %v509 = vld [vmem:[%s0 + $0x98] sm:$0xff]
        %v510 = vld [vmem:[%s0 + $0xa0] sm:$0xff]
        %v511 = vld [vmem:[%s0 + $0xa8] sm:$0xff]
        %v512 = vld [vmem:[%s0 + $0xb0] sm:$0xff]
        %v513 = vld [vmem:[%s0 + $0xb8] sm:$0xff]
        %v514 = vld [vmem:[%s0 + $0xc0] sm:$0xff]
        %v515 = vld [vmem:[%s0 + $0xc8] sm:$0xff]
        %v516 = vld [vmem:[%s0 + $0xd0] sm:$0xff]
        %v517 = vld [vmem:[%s0 + $0xd8] sm:$0xff]
        %v518 = vld [vmem:[%s0 + $0xe0] sm:$0xff]
        %v519 = vld [vmem:[%s0 + $0xe8] sm:$0xff]
        %v520 = vld [vmem:[%s0 + $0xf0] sm:$0xff]
        %v521 = vld [vmem:[%s0 + $0xf8] sm:$0xff]
        %v522 = vmul.f32 %v396, %v490
        %v523 = vmul.f32 %v398, %v491
        %v524 = vmul.f32 %v402, %v492
        %v525 = vmul.f32 %v404, %v493
        %v526 = vmul.f32 %v408, %v494
        %v527 = vmul.f32 %v410, %v495
        %v528 = vmul.f32 %v414, %v496
        %v529 = vmul.f32 %v416, %v497
        %v530 = vmul.f32 %v420, %v498
        %v531 = vmul.f32 %v422, %v499
        %v532 = vmul.f32 %v426, %v500
        %v533 = vmul.f32 %v428, %v501
        %v534 = vmul.f32 %v432, %v502
        %v535 = vmul.f32 %v434, %v503
        %v536 = vmul.f32 %v438, %v504
        %v537 = vmul.f32 %v440, %v505
        %v538 = vmul.f32 %v444, %v506
        %v539 = vmul.f32 %v446, %v507
        %v540 = vmul.f32 %v450, %v508
        %v541 = vmul.f32 %v452, %v509
        %v542 = vmul.f32 %v456, %v510
        %v543 = vmul.f32 %v458, %v511
        %v544 = vmul.f32 %v462, %v512
        %v545 = vmul.f32 %v464, %v513
        %v546 = vmul.f32 %v468, %v514
        %v547 = vmul.f32 %v470, %v515
        %v548 = vmul.f32 %v474, %v516
        %v549 = vmul.f32 %v476, %v517
        %v550 = vmul.f32 %v480, %v518
        %v551 = vmul.f32 %v482, %v519
        %v552 = vmul.f32 %v486, %v520
        %v553 = vmul.f32 %v488, %v521
        %v554 = vld [vmem:[%s250] sm:$0xff]
        %v555 = vld [vmem:[%s250 + $0x8] sm:$0xff]
        %v556 = vld [vmem:[%s250 + $0x10] sm:$0xff]
        %v557 = vld [vmem:[%s250 + $0x18] sm:$0xff]
        %558 = vmatprep.subr.mxu0 %v523
        %559 = vmatpush1.msra.mxu0 %v522
        %560 = vmatprep.subr.mxu0 %v525
        %561 = vmatpush1.msra.mxu0 %v524
        %562 = vmatprep.subr.mxu0 %v527
        %563 = vmatpush1.msra.mxu0 %v526
        %564 = vmatprep.subr.mxu0 %v529
        %565 = vmatpush1.msra.mxu0 %v528
        %566 = vmatprep.subr.mxu0 %v531
        %567 = vmatpush1.msra.mxu0 %v530
        %568 = vmatprep.subr.mxu0 %v533
        %569 = vmatpush1.msra.mxu0 %v532
        %570 = vmatprep.subr.mxu0 %v535
        %571 = vmatpush1.msra.mxu0 %v534
        %572 = vmatprep.subr.mxu0 %v537
        %573 = vmatpush1.msra.mxu0 %v536
        %574 = vmatprep.subr.mxu0 %v539
        %575 = vmatpush1.msra.mxu0 %v538
        %576 = vmatprep.subr.mxu0 %v541
        %577 = vmatpush1.msra.mxu0 %v540
        %578 = vmatprep.subr.mxu0 %v543
        %579 = vmatpush1.msra.mxu0 %v542
        %580 = vmatprep.subr.mxu0 %v545
        %581 = vmatpush1.msra.mxu0 %v544
        %582 = vmatprep.subr.mxu0 %v547
        %583 = vmatpush1.msra.mxu0 %v546
        %584 = vmatprep.subr.mxu0 %v549
        %585 = vmatpush1.msra.mxu0 %v548
        %586 = vmatprep.subr.mxu0 %v551
        %587 = vmatpush1.msra.mxu0 %v550
        %588 = vmatprep.subr.mxu0 %v553
        %589 = vmatpush1.msra.mxu0 %v552
        %590 = vmatprep.subr.mxu0 0.0
        %591 = vmatpush1.msra.mxu0 0.0
        %592 = vmatprep.subr.mxu0 0.0
        %593 = vmatpush1.msra.mxu0 0.0
        %594 = vmatprep.subr.mxu0 0.0
        %595 = vmatpush1.msra.mxu0 0.0
        %596 = vmatprep.subr.mxu0 0.0
        %597 = vmatpush1.msra.mxu0 0.0
        %598 = vmatprep.subr.mxu0 0.0
        %599 = vmatpush1.msra.mxu0 0.0
        %600 = vmatprep.subr.mxu0 0.0
        %601 = vmatpush1.msra.mxu0 0.0
        %602 = vmatprep.subr.mxu0 0.0
        %603 = vmatpush1.msra.mxu0 0.0
        %604 = vmatprep.subr.mxu0 0.0
        %605 = vmatpush1.msra.mxu0 0.0
        %606 = vmatprep.subr.mxu0 0.0
        %607 = vmatpush1.msra.mxu0 0.0
        %608 = vmatprep.subr.mxu0 0.0
        %609 = vmatpush1.msra.mxu0 0.0
        %610 = vmatprep.subr.mxu0 0.0
        %611 = vmatpush1.msra.mxu0 0.0
        %612 = vmatprep.subr.mxu0 0.0
        %613 = vmatpush1.msra.mxu0 0.0
        %614 = vmatprep.subr.mxu0 0.0
        %615 = vmatpush1.msra.mxu0 0.0
        %616 = vmatprep.subr.mxu0 0.0
        %617 = vmatpush1.msra.mxu0 0.0
        %618 = vmatprep.subr.mxu0 0.0
        %619 = vmatpush1.msra.mxu0 0.0
        %620 = vmatprep.subr.mxu0 0.0
        %621 = vmatpush1.msra.mxu0 0.0
        %622 = vmatprep.mubr.f32.mxu0 0.0
        %623 = vmatmul.mubr.f32.gmra.mrb[0].mxu0 %v554
        %v624 = vpop.f32.mrb[0].mxu0
        %v625 = vadd.f32 0.0, %v624
        %v626 = vpop.f32.mrb[0].mxu0
        %v627 = vadd.f32 0.0, %v626
        %628 = vmatprep.mubr.f32.mxu0 0.0
        %629 = vmatmul.mubr.f32.gmra.mrb[0].mxu0 %v555
        %v630 = vpop.f32.mrb[0].mxu0
        %v631 = vadd.f32 0.0, %v630
        %v632 = vpop.f32.mrb[0].mxu0
        %v633 = vadd.f32 0.0, %v632
        %634 = vmatprep.mubr.f32.mxu0 0.0
        %635 = vmatmul.mubr.f32.gmra.mrb[0].mxu0 %v556
        %v636 = vpop.f32.mrb[0].mxu0
        %v637 = vadd.f32 0.0, %v636
        %v638 = vpop.f32.mrb[0].mxu0
        %v639 = vadd.f32 0.0, %v638
        %640 = vmatprep.mubr.f32.mxu0 0.0
        %641 = vmatmul.mubr.f32.gmra.mrb[0].mxu0 %v557
        %v642 = vpop.f32.mrb[0].mxu0
        %v643 = vadd.f32 0.0, %v642
        %v644 = vpop.f32.mrb[0].mxu0
        %v645 = vadd.f32 0.0, %v644
        %646 = vdwg.mxu0
        %647 = vst [vmem:[%s245] sm:$0xff] %v625
        %648 = vst [vmem:[%s245 + $0x8] sm:$0xff] %v627
        %649 = vst [vmem:[%s245 + $0x10] sm:$0xff] %v631
        %650 = vst [vmem:[%s245 + $0x18] sm:$0xff] %v633
        %651 = vst [vmem:[%s245 + $0x20] sm:$0xff] %v637
        %652 = vst [vmem:[%s245 + $0x28] sm:$0xff] %v639
        %653 = vst [vmem:[%s245 + $0x30] sm:$0xff] %v643
        %654 = vst [vmem:[%s245 + $0x38] sm:$0xff] %v645
        %s655 = sand.u32 %s128, 1
        %s656 = scalar_lea.sflag [#allocation4], %s655
        %s657 = sand.u32 %s128, 1
        %s658 = smul.addr %s657, 64
        %s659 = scalar_lea.vmem [#allocation5], %s658
        // Predicated region
        $region41: #{tpu_custom_call.1} parent=35 // pred_check
          %p660 = pneg %p138
        $region42: #{tpu_custom_call.1} parent=35 // pred_check_branch
          %662 = sbr.rel (%p660) target = $region44
        $region43: #{tpu_custom_call.1} parent=35 // pred_region
          %s664 = ssub.s32 1024, 1024
          %665 = vsyncadd %s656, %s664
          %s666 = smul.addr %s21, 8
          %s667 = smul.addr %s666, 128
          %s668 = scalar_lea.hbm %s4, %s667
          %s669 = sshll.u32 %s659, 4
          %s670 = int_to_ptr.vmem [resolvable:$true] %s669
          %675 = dma.vmem_to_hbm [thread:$0]  %s670, 1024, %s668, %s656, 256, 256, 16
        $region44: #{tpu_custom_call.1} parent=35 // pred_fallthru
          _
      $region36: #{tpu_custom_call.1} parent=5 // pred_fallthru
        _
      %p676 = scmp.le.s32.totalorder 2, %s16
      // Predicated region
      $region45: #{tpu_custom_call.1} parent=5 // pred_check
        %p677 = pneg %p676
      $region46: #{tpu_custom_call.1} parent=5 // pred_check_branch
        %679 = sbr.rel (%p677) target = $region48
      $region47: #{tpu_custom_call.1} parent=5 // pred_region
        %s680 = ssub.s32 %s16, 2
        // Predicated region
        $region49: #{tpu_custom_call.1} parent=47 // pred_check
          %p681 = pneg %p144
        $region50: #{tpu_custom_call.1} parent=47 // pred_check_branch
          %683 = sbr.rel (%p681) target = $region52
        $region51: #{tpu_custom_call.1} parent=47 // pred_region
          %s684 = sand.u32 %s129, 1
          %s685 = scalar_lea.sflag [#allocation4], %s684
          %s686 = sand.u32 %s129, 1
          %s687 = smul.addr %s686, 64
          %s688 = scalar_lea.vmem [#allocation5], %s687
          %689 = dma.done %s685, 1024
        $region52: #{tpu_custom_call.1} parent=47 // pred_fallthru
          _
      $region48: #{tpu_custom_call.1} parent=5 // pred_fallthru
        _
    $region6: #{tpu_custom_call.1} parent=1 // loop_footer
      %s20 = sadd.s32 1, %s16
    $region7: #{tpu_custom_call.1} parent=1 // loop_footer_branch
      %15 = sbr.rel target = $region3
    $region8: #{tpu_custom_call.1} parent=1 // loop_exit
      _
    %690 = vsyncpa [#allocation3], 1
    %s691 = scalar_lea.sflag [#allocation3], 1
    %692 = vsyncpa %s691, 1
    %693 = vsyncpa [#allocation4], 1
    %s694 = scalar_lea.sflag [#allocation4], 1
    %695 = vsyncpa %s694, 1

</llo_original>
